<compile_context>
chip_gen: v7x
topology: tpu7x:2x2x1
jax: 0.10.0
libtpu: 0.0.40
codegen_flags: <defaults>
</compile_context>

<pallas_src>
import functools

import jax
import jax.numpy as jnp
from jax.experimental import pallas as pl
from jax.experimental.pallas import tpu as pltpu


# ---------------------------------------------------------------------------
# Kernel
# ---------------------------------------------------------------------------
def _mlp_kernel(bias_offsets, out_dims, x_ref, *refs):
    """Whole MLP for one batch tile.

    x_ref:  [batch_tile, in_dim] f32 (cast to bf16 in-kernel; VPU slots have slack).
    refs = (w0, w1, ..., wL, biases, out_ref):
      w_i     bf16 [out_i, in_i]   (PyTorch [out, in] layout, no transposes)
      biases  f32  [sum_padded(out_i), 1], each layer's segment 8-row aligned
      out_ref      [out_dim, batch_tile]  (feature-major -> lane-dense store)
    Hidden layers get ReLU; the last Linear does not.
    """
    out_ref = refs[-1]
    b_ref = refs[-2]
    w_refs = refs[:-2]
    n_linear = len(w_refs)

    x = x_ref[...].astype(jnp.bfloat16)                # bf16 [tile, in_dim]
    h = None
    for li in range(n_linear):
        w = w_refs[li][...]                            # bf16 [out_li, in_li]
        o = out_dims[li]
        off = bias_offsets[li]
        b = b_ref[off:off + o, :]                      # f32 [out_li, 1] (static slice)
        if li == 0:
            # Contract in_dim of both operands: result [out_0, tile], batch on lanes.
            z = jax.lax.dot_general(
                w, x, (((1,), (1,)), ((), ())),
                preferred_element_type=jnp.float32) + b
        else:
            z = jnp.dot(w, h, preferred_element_type=jnp.float32) + b
        if li < n_linear - 1:
            h = jnp.maximum(z, 0.0).astype(jnp.bfloat16)   # bf16 for next MXU matmul
        else:
            out_ref[...] = z.astype(out_ref.dtype)     # [out_dim, tile] lane-dense store
    # TODO(synk): K-tile with pltpu.emit_pipeline if a single weight matrix ever
    # exceeds VMEM (very wide num_units); irrelevant at these sizes.


# ---------------------------------------------------------------------------
# Hardware hints / tiling policy
# ---------------------------------------------------------------------------
def _tpu_hints():
    """(tensorcores_per_chip, physical_vmem_bytes) with conservative fallbacks."""
    kind = ""
    try:
        kind = jax.devices()[0].device_kind.lower()
    except Exception:
        pass
    num_tc = 2 if "v7" in kind else 1
    vmem = 64 << 20                                    # conservative (v7x per-TC VMEM)
    try:
        vmem = int(pltpu.get_tpu_info().vmem_capacity_bytes)
    except Exception:
        if kind and "v7" not in kind:
            vmem = 128 << 20                           # v4/v5e/v6e have 128 MiB
    return num_tc, vmem


def _default_batch_tile(batch, num_tc):
    """Largest tile (multiple of 128) that divides batch, with a generation-aware
    step-count policy: single-TC parts may run one big step; v7x wants an even
    number of >=2 steps so both TensorCores stay busy."""
    if batch <= 128:
        return batch
    candidates = [t for t in (8192, 4096, 2048, 1024, 512, 256, 128)
                  if t <= batch and batch % t == 0]
    if num_tc <= 1:
        if batch <= 8192:
            return batch                               # single step: working set is tiny
        return candidates[0] if candidates else batch
    for t in candidates:                               # v7x: even step count >= 2
        steps = batch // t
        if steps >= 2 and steps % 2 == 0:
            return t
    for t in candidates:
        if batch // t >= 2:
            return t
    return candidates[0] if candidates else batch


def _vmem_limit_bytes(in_dim, batch_tile, out_dims, weights, biases, physical_vmem):
    """Explicit scoped-VMEM budget: tiles + params + live activations, 2x headroom,
    capped at 75% of physical VMEM (leaves room for compiler internal scratch)."""
    param_bytes = sum(w.size * w.dtype.itemsize for w in weights)
    param_bytes += biases.size * biases.dtype.itemsize
    widest = max([in_dim] + list(out_dims))
    x_bytes = 2 * in_dim * batch_tile * 4              # f32 x tile, double-buffered
    o_bytes = 2 * out_dims[-1] * batch_tile * 4        # f32 out tile, double-buffered
    act_bytes = 4 * widest * batch_tile * 4            # live f32/bf16 activations + slack
    total = 2 * param_bytes + x_bytes + o_bytes + act_bytes + (2 << 20)
    cap = (physical_vmem * 3) // 4
    return int(min(cap, max(8 << 20, 2 * total)))


# ---------------------------------------------------------------------------
# Wrapper
# ---------------------------------------------------------------------------
def tube_width_predictor_forward(x, params, *, batch_tile=None):
    """Pallas forward pass of TubeWidthPredictor.

    x:      [batch, input_size] float32
    params: output of prepare_params() (bf16 weights [out,in], packed f32 biases)
    Returns [batch, output_dim] float32.
    """
    weights = params["weights"]
    biases = params["biases"]
    bias_offsets = params["bias_offsets"]
    out_dims = params["out_dims"]

    batch, in_dim = x.shape
    out_dim = out_dims[-1]

    num_tc, physical_vmem = _tpu_hints()
    if batch_tile is None:
        batch_tile = _default_batch_tile(batch, num_tc)
    if batch % batch_tile:
        # TODO(synk): pad/mask ragged batches instead of requiring divisibility.
        raise ValueError(f"batch={batch} must be divisible by batch_tile={batch_tile}")
    if batch_tile != batch and batch_tile % 128:
        raise ValueError("batch_tile must be a multiple of 128 lanes (or the full batch)")

    flat_inputs = [x]
    in_specs = [pl.BlockSpec((batch_tile, in_dim), lambda i: (i, 0))]
    for w in weights:                                   # grid-invariant: block index (0,0)
        flat_inputs.append(w)
        in_specs.append(pl.BlockSpec(w.shape, lambda i: (0, 0)))
    flat_inputs.append(biases)
    in_specs.append(pl.BlockSpec(biases.shape, lambda i: (0, 0)))

    kernel = functools.partial(_mlp_kernel, bias_offsets, out_dims)
    y_t = pl.pallas_call(
        kernel,
        out_shape=jax.ShapeDtypeStruct((out_dim, batch), jnp.float32),
        grid_spec=pltpu.PrefetchScalarGridSpec(
            num_scalar_prefetch=0,
            grid=(batch // batch_tile,),
            in_specs=in_specs,
            out_specs=pl.BlockSpec((out_dim, batch_tile), lambda i: (0, i)),
        ),
        compiler_params=pltpu.CompilerParams(
            dimension_semantics=("parallel",),          # independent steps -> 2 TCs on v7x
            vmem_limit_bytes=_vmem_limit_bytes(
                in_dim, batch_tile, out_dims, weights, biases, physical_vmem),
        ),
    )(*flat_inputs)
    # [out_dim, batch] -> [batch, out_dim]; trivial for out_dim == 1.
    return y_t.T


# ---------------------------------------------------------------------------
# Parameter setup (one-time) and references
# ---------------------------------------------------------------------------
def init_params(key, input_size, num_units, num_layers, output_dim=1):
    """Deterministic init mirroring the module's layer shapes (PyTorch [out,in] layout)."""
    dims = [input_size] + [num_units] * num_layers + [output_dim]
    params = []
    for li in range(len(dims) - 1):
        fan_in, fan_out = dims[li], dims[li + 1]
        key, kw, kb = jax.random.split(key, 3)
        bound = 1.0 / jnp.sqrt(fan_in)
        w = jax.random.uniform(kw, (fan_out, fan_in), jnp.float32, -bound, bound)
        b = jax.random.uniform(kb, (fan_out,), jnp.float32, -bound, bound)
        params.append((w, b))
    return params


def prepare_params(raw_params):
    """One-time prep (NOT per call): cast weights to bf16 (MXU operands) keeping the
    PyTorch [out, in] layout, and pack all biases into one f32 column array with each
    layer's segment padded to a multiple of 8 rows (sublane-aligned static slices)."""
    weights = [jnp.asarray(w, jnp.bfloat16) for w, _ in raw_params]
    out_dims = tuple(int(w.shape[0]) for w, _ in raw_params)
    segs, offsets, cur = [], [], 0
    for (_, b), o in zip(raw_params, out_dims):
        offsets.append(cur)
        seg = jnp.asarray(b, jnp.float32).reshape(-1, 1)
        pad = (-o) % 8
        if pad:
            seg = jnp.concatenate([seg, jnp.zeros((pad, 1), jnp.float32)], axis=0)
        segs.append(seg)
        cur += o + pad
    biases = jnp.concatenate(segs, axis=0)              # f32 [sum_padded(out_i), 1]
    return {"weights": weights, "biases": biases,
            "bias_offsets": tuple(offsets), "out_dims": out_dims}


def reference_forward(x, raw_params):
    """Plain-JAX f32 reference of the PyTorch forward."""
    h = x
    for li, (w, b) in enumerate(raw_params):
        h = h @ w.T + b
        if li < len(raw_params) - 1:
            h = jnp.maximum(h, 0.0)
    return h


def reference_forward_bf16(x, raw_params):
    """Reference matching the kernel's numerics (bf16 operands, f32 accumulation)."""
    h = x.astype(jnp.bfloat16)
    out = None
    for li, (w, b) in enumerate(raw_params):
        z = jnp.dot(h, jnp.asarray(w, jnp.bfloat16).T,
                    preferred_element_type=jnp.float32) + b
        if li < len(raw_params) - 1:
            h = jnp.maximum(z, 0.0).astype(jnp.bfloat16)
        else:
            out = z
    return out


# ---------------------------------------------------------------------------
# Demo / self-check
# ---------------------------------------------------------------------------
if __name__ == "__main__":
    key = jax.random.PRNGKey(0)
    input_size, num_units, num_layers, output_dim = 16, 32, 2, 1
    batch = 256

    kx, kp = jax.random.split(key)
    x = jax.random.normal(kx, (batch, input_size), jnp.float32)
    raw_params = init_params(kp, input_size, num_units, num_layers, output_dim)
    params = prepare_params(raw_params)          # one-time parameter prep

    y = tube_width_predictor_forward(x, params)  # tile=256 (1 step) on v5e/v6e, 128x2 on v7x
    y = jax.block_until_ready(y)

    y_ref_bf16 = reference_forward_bf16(x, raw_params)
    y_ref_f32 = reference_forward(x, raw_params)
    assert y.shape == (batch, output_dim)
    assert jnp.allclose(y, y_ref_bf16, atol=1e-3, rtol=1e-3), \
        float(jnp.max(jnp.abs(y - y_ref_bf16)))
    # Looser vs the pure-f32 reference: matmul operands are bf16 by design.
    assert jnp.allclose(y, y_ref_f32, atol=5e-2, rtol=5e-2), \
        float(jnp.max(jnp.abs(y - y_ref_f32)))

    print("KERNEL_OK")
</pallas_src>

<mosaic_0001>
module attributes {stable_mosaic.version = 11 : i64} {
  func.func @_mlp_kernel(%arg0: i32, %arg1: memref<256x16xf32, #tpu.memory_space<vmem>>, %arg2: memref<32x16xbf16, #tpu.memory_space<vmem>>, %arg3: memref<32x32xbf16, #tpu.memory_space<vmem>>, %arg4: memref<1x32xbf16, #tpu.memory_space<vmem>>, %arg5: memref<72x1xf32, #tpu.memory_space<vmem>>, %arg6: memref<1x256xf32, #tpu.memory_space<vmem>>) attributes {dimension_semantics = [#tpu.dimension_semantics<parallel>], iteration_bounds = array<i64: 1>, scalar_prefetch = 0 : i64, scratch_operands = 0 : i64, tpu.core_type = #tpu.core_type<tc>, window_params = [{transform_indices = @transform_0, window_bounds = array<i64: 256, 16>}, {pipeline_mode = #tpu.pipeline_mode<synchronous>, transform_indices = @transform_1, window_bounds = array<i64: 32, 16>}, {pipeline_mode = #tpu.pipeline_mode<synchronous>, transform_indices = @transform_2, window_bounds = array<i64: 32, 32>}, {pipeline_mode = #tpu.pipeline_mode<synchronous>, transform_indices = @transform_3, window_bounds = array<i64: 1, 32>}, {pipeline_mode = #tpu.pipeline_mode<synchronous>, transform_indices = @transform_4, window_bounds = array<i64: 72, 1>}, {transform_indices = @transform_5, window_bounds = array<i64: 1, 256>}]} {
    %c0 = arith.constant 0 : index
    %c0_0 = arith.constant 0 : index
    %0 = vector.load %arg1[%c0, %c0_0] : memref<256x16xf32, #tpu.memory_space<vmem>>, vector<256x16xf32>
    %1 = arith.truncf %0 : vector<256x16xf32> to vector<256x16xbf16>
    %c0_1 = arith.constant 0 : index
    %c0_2 = arith.constant 0 : index
    %2 = vector.load %arg2[%c0_1, %c0_2] : memref<32x16xbf16, #tpu.memory_space<vmem>>, vector<32x16xbf16>
    %c0_3 = arith.constant 0 : index
    %c0_4 = arith.constant 0 : index
    %3 = vector.load %arg5[%c0_3, %c0_4] : memref<72x1xf32, #tpu.memory_space<vmem>>, vector<32x1xf32>
    %cst = arith.constant dense<0.000000e+00> : vector<32x256xf32>
    %4 = tpu.matmul %2, %1, %cst {dimension_numbers = #tpu.dot_dimension_numbers<[1], [1], [0], [0], [0, 0, 1, 0], [], []>} : vector<32x16xbf16>, vector<256x16xbf16>, vector<32x256xf32> -> vector<32x256xf32>
    %5 = vector.broadcast %3 : vector<32x1xf32> to vector<32x256xf32>
    %6 = arith.addf %4, %5 : vector<32x256xf32>
    %cst_5 = arith.constant 0.000000e+00 : f32
    %7 = vector.broadcast %cst_5 : f32 to vector<32x256xf32>
    %8 = arith.maximumf %6, %7 : vector<32x256xf32>
    %9 = arith.truncf %8 : vector<32x256xf32> to vector<32x256xbf16>
    %c0_6 = arith.constant 0 : index
    %c0_7 = arith.constant 0 : index
    %10 = vector.load %arg3[%c0_6, %c0_7] : memref<32x32xbf16, #tpu.memory_space<vmem>>, vector<32x32xbf16>
    %c32 = arith.constant 32 : index
    %c0_8 = arith.constant 0 : index
    %11 = vector.load %arg5[%c32, %c0_8] : memref<72x1xf32, #tpu.memory_space<vmem>>, vector<32x1xf32>
    %cst_9 = arith.constant dense<0.000000e+00> : vector<32x256xf32>
    %12 = tpu.matmul %10, %9, %cst_9 {dimension_numbers = #tpu.dot_dimension_numbers<[1], [0], [0], [1], [0, 0, 1, 1], [], []>} : vector<32x32xbf16>, vector<32x256xbf16>, vector<32x256xf32> -> vector<32x256xf32>
    %13 = vector.broadcast %11 : vector<32x1xf32> to vector<32x256xf32>
    %14 = arith.addf %12, %13 : vector<32x256xf32>
    %cst_10 = arith.constant 0.000000e+00 : f32
    %15 = vector.broadcast %cst_10 : f32 to vector<32x256xf32>
    %16 = arith.maximumf %14, %15 : vector<32x256xf32>
    %17 = arith.truncf %16 : vector<32x256xf32> to vector<32x256xbf16>
    %c0_11 = arith.constant 0 : index
    %c0_12 = arith.constant 0 : index
    %18 = vector.load %arg4[%c0_11, %c0_12] : memref<1x32xbf16, #tpu.memory_space<vmem>>, vector<1x32xbf16>
    %c64 = arith.constant 64 : index
    %c0_13 = arith.constant 0 : index
    %19 = vector.load %arg5[%c64, %c0_13] : memref<72x1xf32, #tpu.memory_space<vmem>>, vector<1x1xf32>
    %cst_14 = arith.constant dense<0.000000e+00> : vector<1x256xf32>
    %20 = tpu.matmul %18, %17, %cst_14 {dimension_numbers = #tpu.dot_dimension_numbers<[1], [0], [0], [1], [0, 0, 1, 1], [], []>} : vector<1x32xbf16>, vector<32x256xbf16>, vector<1x256xf32> -> vector<1x256xf32>
    %21 = vector.broadcast %19 : vector<1x1xf32> to vector<1x256xf32>
    %22 = arith.addf %20, %21 : vector<1x256xf32>
    %c0_15 = arith.constant 0 : index
    %c0_16 = arith.constant 0 : index
    %23 = vector.load %arg6[%c0_15, %c0_16] : memref<1x256xf32, #tpu.memory_space<vmem>>, vector<1x256xf32>
    tpu.vector_store %arg6[%c0_15, %c0_16], %22 {strides = array<i32>} : memref<1x256xf32, #tpu.memory_space<vmem>>, vector<1x256xf32>,
    return
  }
  func.func @transform_0(%arg0: i32) -> (i32, i32) {
    %c0_i32 = arith.constant 0 : i32
    %c0_i32_0 = arith.constant 0 : i32
    return %arg0, %c0_i32 : i32, i32
  }
  func.func @transform_1(%arg0: i32) -> (i32, i32) {
    %c0_i32 = arith.constant 0 : i32
    %c0_i32_0 = arith.constant 0 : i32
    %c0_i32_1 = arith.constant 0 : i32
    return %c0_i32, %c0_i32_0 : i32, i32
  }
  func.func @transform_2(%arg0: i32) -> (i32, i32) {
    %c0_i32 = arith.constant 0 : i32
    %c0_i32_0 = arith.constant 0 : i32
    %c0_i32_1 = arith.constant 0 : i32
    return %c0_i32, %c0_i32_0 : i32, i32
  }
  func.func @transform_3(%arg0: i32) -> (i32, i32) {
    %c0_i32 = arith.constant 0 : i32
    %c0_i32_0 = arith.constant 0 : i32
    %c0_i32_1 = arith.constant 0 : i32
    return %c0_i32, %c0_i32_0 : i32, i32
  }
  func.func @transform_4(%arg0: i32) -> (i32, i32) {
    %c0_i32 = arith.constant 0 : i32
    %c0_i32_0 = arith.constant 0 : i32
    %c0_i32_1 = arith.constant 0 : i32
    return %c0_i32, %c0_i32_0 : i32, i32
  }
  func.func @transform_5(%arg0: i32) -> (i32, i32) {
    %c0_i32 = arith.constant 0 : i32
    %c0_i32_0 = arith.constant 0 : i32
    return %c0_i32, %arg0 : i32, i32
  }
}

</mosaic_0001>

<llo_original>
// kernel: tpu_custom_call.1
$region0: #{tpu_custom_call.1}
  #allocation0 [shape = 'u32[]', space=smem, size = 0x4, offset = 0x4, fixed_abs, tag = 'smem constant byte address 0x4 - core index']
  #allocation1 [shape = 'u32[144,128]{1,0:T(1,128)}', space=vmem, size = 0x12000, scoped, tag = 'internal scratch']
  %s0 = inlined_call_operand.vmem [shape: f32[256,16], index: 0, kind: input, shape index: {}]
  %s1 = inlined_call_operand.vmem [shape: bf16[32,16], index: 1, kind: input, shape index: {}]
  %s2 = inlined_call_operand.vmem [shape: bf16[32,32], index: 2, kind: input, shape index: {}]
  %s3 = inlined_call_operand.vmem [shape: bf16[1,32], index: 3, kind: input, shape index: {}]
  %s4 = inlined_call_operand.vmem [shape: f32[72,1], index: 4, kind: input, shape index: {}]
  %s5 = inlined_call_operand.hbm [shape: f32[1,256], index: 5, kind: output, shape index: {}]
  %s6 = sld [smem:[#allocation0]]
  $region30: #{tpu_custom_call.1} parent=0
    _
  %s8 = ssub.s32 1, %s6
  %s9 = scalar_select 0, %s8, %s6
  $region1: #{tpu_custom_call.1} parent=0
    #allocation2 [shape = 'u8[1024]{0}', space=vmem, size = 0x400, scoped, tag = 'output window, operand 0, single buffered']
    #allocation3 [shape = 's32[1]{0}', space=sflag, size = 0x4, scoped, tag = 'scoped memory for tpu_custom_call.1']
    %10 = vsyncpa [#allocation3], 0
    // Predicated region
    $region2: #{tpu_custom_call.1} parent=1 // pred_check
      _
    $region3: #{tpu_custom_call.1} parent=1 // pred_check_branch
      %12 = sbr.rel (0) target = $region5
    $region4: #{tpu_custom_call.1} parent=1 // pred_region
      _
    $region5: #{tpu_custom_call.1} parent=1 // pred_fallthru
      _
    // Predicated region
    $region6: #{tpu_custom_call.1} parent=1 // pred_check
      _
    $region7: #{tpu_custom_call.1} parent=1 // pred_check_branch
      %14 = sbr.rel (0) target = $region9
    $region8: #{tpu_custom_call.1} parent=1 // pred_region
      _
    $region9: #{tpu_custom_call.1} parent=1 // pred_fallthru
      _
    // Predicated region
    $region10: #{tpu_custom_call.1} parent=1 // pred_check
      _
    $region11: #{tpu_custom_call.1} parent=1 // pred_check_branch
      %16 = sbr.rel (0) target = $region13
    $region12: #{tpu_custom_call.1} parent=1 // pred_region
      _
    $region13: #{tpu_custom_call.1} parent=1 // pred_fallthru
      _
    // Predicated region
    $region14: #{tpu_custom_call.1} parent=1 // pred_check
      _
    $region15: #{tpu_custom_call.1} parent=1 // pred_check_branch
      %18 = sbr.rel (0) target = $region17
    $region16: #{tpu_custom_call.1} parent=1 // pred_region
      _
    $region17: #{tpu_custom_call.1} parent=1 // pred_fallthru
      _
    // Predicated region
    $region18: #{tpu_custom_call.1} parent=1 // pred_check
      _
    $region19: #{tpu_custom_call.1} parent=1 // pred_check_branch
      %20 = sbr.rel (0) target = $region21
    $region20: #{tpu_custom_call.1} parent=1 // pred_region
      _
    $region21: #{tpu_custom_call.1} parent=1 // pred_fallthru
      _
    %v22 = vld [vmem:[%s0] sm:$0xff]
    %v23 = vld [vmem:[%s0 + $0x8] sm:$0xff]
    %v24 = vld [vmem:[%s0 + $0x10] sm:$0xff]
    %v25 = vld [vmem:[%s0 + $0x18] sm:$0xff]
    %v26 = vld [vmem:[%s0 + $0x20] sm:$0xff]
    %v27 = vld [vmem:[%s0 + $0x28] sm:$0xff]
    %v28 = vld [vmem:[%s0 + $0x30] sm:$0xff]
    %v29 = vld [vmem:[%s0 + $0x38] sm:$0xff]
    %v30 = vld [vmem:[%s0 + $0x40] sm:$0xff]
    %v31 = vld [vmem:[%s0 + $0x48] sm:$0xff]
    %v32 = vld [vmem:[%s0 + $0x50] sm:$0xff]
    %v33 = vld [vmem:[%s0 + $0x58] sm:$0xff]
    %v34 = vld [vmem:[%s0 + $0x60] sm:$0xff]
    %v35 = vld [vmem:[%s0 + $0x68] sm:$0xff]
    %v36 = vld [vmem:[%s0 + $0x70] sm:$0xff]
    %v37 = vld [vmem:[%s0 + $0x78] sm:$0xff]
    %v38 = vld [vmem:[%s0 + $0x80] sm:$0xff]
    %v39 = vld [vmem:[%s0 + $0x88] sm:$0xff]
    %v40 = vld [vmem:[%s0 + $0x90] sm:$0xff]
    %v41 = vld [vmem:[%s0 + $0x98] sm:$0xff]
    %v42 = vld [vmem:[%s0 + $0xa0] sm:$0xff]
    %v43 = vld [vmem:[%s0 + $0xa8] sm:$0xff]
    %v44 = vld [vmem:[%s0 + $0xb0] sm:$0xff]
    %v45 = vld [vmem:[%s0 + $0xb8] sm:$0xff]
    %v46 = vld [vmem:[%s0 + $0xc0] sm:$0xff]
    %v47 = vld [vmem:[%s0 + $0xc8] sm:$0xff]
    %v48 = vld [vmem:[%s0 + $0xd0] sm:$0xff]
    %v49 = vld [vmem:[%s0 + $0xd8] sm:$0xff]
    %v50 = vld [vmem:[%s0 + $0xe0] sm:$0xff]
    %v51 = vld [vmem:[%s0 + $0xe8] sm:$0xff]
    %v52 = vld [vmem:[%s0 + $0xf0] sm:$0xff]
    %v53 = vld [vmem:[%s0 + $0xf8] sm:$0xff]
    %v54 = vpack.c.bf16 %v23, %v22
    %v55 = vpack.c.bf16 %v25, %v24
    %v56 = vpack.c.bf16 %v27, %v26
    %v57 = vpack.c.bf16 %v29, %v28
    %v58 = vpack.c.bf16 %v31, %v30
    %v59 = vpack.c.bf16 %v33, %v32
    %v60 = vpack.c.bf16 %v35, %v34
    %v61 = vpack.c.bf16 %v37, %v36
    %v62 = vpack.c.bf16 %v39, %v38
    %v63 = vpack.c.bf16 %v41, %v40
    %v64 = vpack.c.bf16 %v43, %v42
    %v65 = vpack.c.bf16 %v45, %v44
    %v66 = vpack.c.bf16 %v47, %v46
    %v67 = vpack.c.bf16 %v49, %v48
    %v68 = vpack.c.bf16 %v51, %v50
    %v69 = vpack.c.bf16 %v53, %v52
    %v70 = vld [vmem:[%s1] sm:$0xf]
    %v71 = vld [vmem:[%s1 + $0x4] sm:$0xf]
    %v72 = vld [vmem:[%s1 + $0x8] sm:$0xf]
    %v73 = vld [vmem:[%s1 + $0xc] sm:$0xf]
    %v74 = vld [vmem:[%s4] sm:$0xff]
    %v75 = vld [vmem:[%s4 + $0x8] sm:$0xff]
    %v76 = vld [vmem:[%s4 + $0x10] sm:$0xff]
    %v77 = vld [vmem:[%s4 + $0x18] sm:$0xff]
    %79 = vset.pattern.permute.xlu0 0
    %80 = vperm.xlu0 %79, %v74
    %v81 = vpop.permute.xlu0 %80
    %84 = vset.pattern.permute.xlu0 0
    %85 = vperm.xlu0 %84, %v75
    %v86 = vpop.permute.xlu0 %85
    %89 = vset.pattern.permute.xlu0 0
    %90 = vperm.xlu0 %89, %v76
    %v91 = vpop.permute.xlu0 %90
    %94 = vset.pattern.permute.xlu0 0
    %95 = vperm.xlu0 %94, %v77
    %v96 = vpop.permute.xlu0 %95
    %v102 = vunpack.c.l.b16 %v70
    %v103 = vunpack.c.l.b16 %v71
    %v104 = vunpack.c.l.b16 %v72
    %v105 = vunpack.c.l.b16 %v73
    %v106 = vpack.c.b16 %v103, %v102
    %v107 = vpack.c.b16 %v105, %v104
    %vm108 = vcmask 130048
    %v110 = vsel %vm108, %v106, 0
    %v113 = vsel %vm108, %v107, 0
    %v116 = vsel %vm108, %v54, 0
    %v119 = vsel %vm108, %v55, 0
    %v122 = vsel %vm108, %v56, 0
    %v125 = vsel %vm108, %v57, 0
    %v128 = vsel %vm108, %v58, 0
    %v131 = vsel %vm108, %v59, 0
    %v134 = vsel %vm108, %v60, 0
    %v137 = vsel %vm108, %v61, 0
    %v140 = vsel %vm108, %v62, 0
    %v143 = vsel %vm108, %v63, 0
    %v146 = vsel %vm108, %v64, 0
    %v149 = vsel %vm108, %v65, 0
    %v152 = vsel %vm108, %v66, 0
    %v155 = vsel %vm108, %v67, 0
    %v158 = vsel %vm108, %v68, 0
    %v161 = vsel %vm108, %v69, 0
    %163 = vmatprep.subr.bf16.mxu0 0
    %164 = vmatpush1.bf16.xpose.msra.mxu0 %v116
    %165 = vmatprep.subr.bf16.mxu0 0
    %166 = vmatpush1.bf16.xpose.msra.mxu0 %v119
    %167 = vmatprep.subr.bf16.mxu0 0
    %168 = vmatpush1.bf16.xpose.msra.mxu0 %v122
    %169 = vmatprep.subr.bf16.mxu0 0
    %170 = vmatpush1.bf16.xpose.msra.mxu0 %v125
    %171 = vmatprep.subr.bf16.mxu0 0
    %172 = vmatpush1.bf16.xpose.msra.mxu0 %v128
    %173 = vmatprep.subr.bf16.mxu0 0
    %174 = vmatpush1.bf16.xpose.msra.mxu0 %v131
    %175 = vmatprep.subr.bf16.mxu0 0
    %176 = vmatpush1.bf16.xpose.msra.mxu0 %v134
    %177 = vmatprep.subr.bf16.mxu0 0
    %178 = vmatpush1.bf16.xpose.msra.mxu0 %v137
    %179 = vmatprep.subr.bf16.mxu0 0
    %180 = vmatpush1.bf16.xpose.msra.mxu0 %v140
    %181 = vmatprep.subr.bf16.mxu0 0
    %182 = vmatpush1.bf16.xpose.msra.mxu0 %v143
    %183 = vmatprep.subr.bf16.mxu0 0
    %184 = vmatpush1.bf16.xpose.msra.mxu0 %v146
    %185 = vmatprep.subr.bf16.mxu0 0
    %186 = vmatpush1.bf16.xpose.msra.mxu0 %v149
    %187 = vmatprep.subr.bf16.mxu0 0
    %188 = vmatpush1.bf16.xpose.msra.mxu0 %v152
    %189 = vmatprep.subr.bf16.mxu0 0
    %190 = vmatpush1.bf16.xpose.msra.mxu0 %v155
    %191 = vmatprep.subr.bf16.mxu0 0
    %192 = vmatpush1.bf16.xpose.msra.mxu0 %v158
    %193 = vmatprep.subr.bf16.mxu0 0
    %194 = vmatpush1.bf16.xpose.msra.mxu0 %v161
    %195 = vmatprep.mubr.bf16.mxu0 0
    %196 = vmatmul.mubr.bf16.gmra.mrb[0].mxu0 %v110
    %v197 = vpop.f32.mrb[0].mxu0
    %v198 = vadd.f32 %v81, %v197
    %v199 = vpop.f32.mrb[0].mxu0
    %v200 = vadd.f32 %v81, %v199
    %v201 = vpop.f32.mrb[0].mxu0
    %v202 = vadd.f32 %v86, %v201
    %v203 = vpop.f32.mrb[0].mxu0
    %v204 = vadd.f32 %v86, %v203
    %205 = vmatprep.mubr.bf16.mxu0 0
    %206 = vmatmul.mubr.bf16.gmra.mrb[0].mxu0 %v113
    %v207 = vpop.f32.mrb[0].mxu0
    %v208 = vadd.f32 %v91, %v207
    %v209 = vpop.f32.mrb[0].mxu0
    %v210 = vadd.f32 %v91, %v209
    %v211 = vpop.f32.mrb[0].mxu0
    %v212 = vadd.f32 %v96, %v211
    %v213 = vpop.f32.mrb[0].mxu0
    %v214 = vadd.f32 %v96, %v213
    %215 = vdwg.mxu0
    %v216 = vmax.f32 %v198, 0.0
    %v217 = vmax.f32 %v200, 0.0
    %v218 = vmax.f32 %v202, 0.0
    %v219 = vmax.f32 %v204, 0.0
    %v220 = vmax.f32 %v208, 0.0
    %v221 = vmax.f32 %v210, 0.0
    %v222 = vmax.f32 %v212, 0.0
    %v223 = vmax.f32 %v214, 0.0
    %v224 = vpack.c.bf16 %v218, %v216
    %v225 = vpack.c.bf16 %v219, %v217
    %v226 = vpack.c.bf16 %v222, %v220
    %v227 = vpack.c.bf16 %v223, %v221
    %v228 = vld [vmem:[%s2] sm:$0xf]
    %v229 = vld [vmem:[%s2 + $0x4] sm:$0xf]
    %v230 = vld [vmem:[%s2 + $0x8] sm:$0xf]
    %v231 = vld [vmem:[%s2 + $0xc] sm:$0xf]
    %v232 = vld [vmem:[%s4 + $0x20] sm:$0xff]
    %v233 = vld [vmem:[%s4 + $0x28] sm:$0xff]
    %v234 = vld [vmem:[%s4 + $0x30] sm:$0xff]
    %v235 = vld [vmem:[%s4 + $0x38] sm:$0xff]
    %237 = vset.pattern.permute.xlu0 0
    %238 = vperm.xlu0 %237, %v232
    %v239 = vpop.permute.xlu0 %238
    %242 = vset.pattern.permute.xlu0 0
    %243 = vperm.xlu0 %242, %v233
    %v244 = vpop.permute.xlu0 %243
    %247 = vset.pattern.permute.xlu0 0
    %248 = vperm.xlu0 %247, %v234
    %v249 = vpop.permute.xlu0 %248
    %252 = vset.pattern.permute.xlu0 0
    %253 = vperm.xlu0 %252, %v235
    %v254 = vpop.permute.xlu0 %253
    %v260 = vunpack.c.l.b16 %v228
    %v261 = vunpack.c.l.b16 %v229
    %v262 = vunpack.c.l.b16 %v230
    %v263 = vunpack.c.l.b16 %v231
    %v264 = vpack.c.b16 %v261, %v260
    %v265 = vpack.c.b16 %v263, %v262
    %vm266 = vcmask 261120
    %v268 = vsel %vm266, %v264, 0
    %v271 = vsel %vm266, %v265, 0
    %273 = vmatprep.subr.bf16.mxu0 %v225
    %274 = vmatpush1.bf16.msra.mxu0 %v224
    %275 = vmatprep.subr.bf16.mxu0 %v227
    %276 = vmatpush1.bf16.msra.mxu0 %v226
    %277 = vmatprep.subr.bf16.mxu0 0
    %278 = vmatpush1.bf16.msra.mxu0 0
    %279 = vmatprep.subr.bf16.mxu0 0
    %280 = vmatpush1.bf16.msra.mxu0 0
    %281 = vmatprep.subr.bf16.mxu0 0
    %282 = vmatpush1.bf16.msra.mxu0 0
    %283 = vmatprep.subr.bf16.mxu0 0
    %284 = vmatpush1.bf16.msra.mxu0 0
    %285 = vmatprep.subr.bf16.mxu0 0
    %286 = vmatpush1.bf16.msra.mxu0 0
    %287 = vmatprep.subr.bf16.mxu0 0
    %288 = vmatpush1.bf16.msra.mxu0 0
    %289 = vmatprep.subr.bf16.mxu0 0
    %290 = vmatpush1.bf16.msra.mxu0 0
    %291 = vmatprep.subr.bf16.mxu0 0
    %292 = vmatpush1.bf16.msra.mxu0 0
    %293 = vmatprep.subr.bf16.mxu0 0
    %294 = vmatpush1.bf16.msra.mxu0 0
    %295 = vmatprep.subr.bf16.mxu0 0
    %296 = vmatpush1.bf16.msra.mxu0 0
    %297 = vmatprep.subr.bf16.mxu0 0
    %298 = vmatpush1.bf16.msra.mxu0 0
    %299 = vmatprep.subr.bf16.mxu0 0
    %300 = vmatpush1.bf16.msra.mxu0 0
    %301 = vmatprep.subr.bf16.mxu0 0
    %302 = vmatpush1.bf16.msra.mxu0 0
    %303 = vmatprep.subr.bf16.mxu0 0
    %304 = vmatpush1.bf16.msra.mxu0 0
    %305 = vmatprep.mubr.bf16.mxu0 0
    %306 = vmatmul.mubr.bf16.gmra.mrb[0].mxu0 %v268
    %v307 = vpop.f32.mrb[0].mxu0
    %v308 = vadd.f32 %v239, %v307
    %v309 = vpop.f32.mrb[0].mxu0
    %v310 = vadd.f32 %v239, %v309
    %v311 = vpop.f32.mrb[0].mxu0
    %v312 = vadd.f32 %v244, %v311
    %v313 = vpop.f32.mrb[0].mxu0
    %v314 = vadd.f32 %v244, %v313
    %315 = vmatprep.mubr.bf16.mxu0 0
    %316 = vmatmul.mubr.bf16.gmra.mrb[0].mxu0 %v271
    %v317 = vpop.f32.mrb[0].mxu0
    %v318 = vadd.f32 %v249, %v317
    %v319 = vpop.f32.mrb[0].mxu0
    %v320 = vadd.f32 %v249, %v319
    %v321 = vpop.f32.mrb[0].mxu0
    %v322 = vadd.f32 %v254, %v321
    %v323 = vpop.f32.mrb[0].mxu0
    %v324 = vadd.f32 %v254, %v323
    %325 = vdwg.mxu0
    %v326 = vmax.f32 %v308, 0.0
    %v327 = vmax.f32 %v310, 0.0
    %v328 = vmax.f32 %v312, 0.0
    %v329 = vmax.f32 %v314, 0.0
    %v330 = vmax.f32 %v318, 0.0
    %v331 = vmax.f32 %v320, 0.0
    %v332 = vmax.f32 %v322, 0.0
    %v333 = vmax.f32 %v324, 0.0
    %v334 = vpack.c.bf16 %v328, %v326
    %v335 = vpack.c.bf16 %v329, %v327
    %v336 = vpack.c.bf16 %v332, %v330
    %v337 = vpack.c.bf16 %v333, %v331
    %v338 = vld [vmem:[%s3] sm:$0x1]
    %v339 = vld [vmem:[%s4 + $0x40] sm:$0x1]
    %341 = vset.pattern.permute.xlu0 0
    %342 = vperm.xlu0 %341, %v339
    %v343 = vpop.permute.xlu0 %342
    %v346 = vsel %vm266, %v338, 0
    %348 = vmatprep.subr.bf16.mxu0 %v335
    %349 = vmatpush1.bf16.msra.mxu0 %v334
    %350 = vmatprep.subr.bf16.mxu0 %v337
    %351 = vmatpush1.bf16.msra.mxu0 %v336
    %352 = vmatprep.subr.bf16.mxu0 0
    %353 = vmatpush1.bf16.msra.mxu0 0
    %354 = vmatprep.subr.bf16.mxu0 0
    %355 = vmatpush1.bf16.msra.mxu0 0
    %356 = vmatprep.subr.bf16.mxu0 0
    %357 = vmatpush1.bf16.msra.mxu0 0
    %358 = vmatprep.subr.bf16.mxu0 0
    %359 = vmatpush1.bf16.msra.mxu0 0
    %360 = vmatprep.subr.bf16.mxu0 0
    %361 = vmatpush1.bf16.msra.mxu0 0
    %362 = vmatprep.subr.bf16.mxu0 0
    %363 = vmatpush1.bf16.msra.mxu0 0
    %364 = vmatprep.subr.bf16.mxu0 0
    %365 = vmatpush1.bf16.msra.mxu0 0
    %366 = vmatprep.subr.bf16.mxu0 0
    %367 = vmatpush1.bf16.msra.mxu0 0
    %368 = vmatprep.subr.bf16.mxu0 0
    %369 = vmatpush1.bf16.msra.mxu0 0
    %370 = vmatprep.subr.bf16.mxu0 0
    %371 = vmatpush1.bf16.msra.mxu0 0
    %372 = vmatprep.subr.bf16.mxu0 0
    %373 = vmatpush1.bf16.msra.mxu0 0
    %374 = vmatprep.subr.bf16.mxu0 0
    %375 = vmatpush1.bf16.msra.mxu0 0
    %376 = vmatprep.subr.bf16.mxu0 0
    %377 = vmatpush1.bf16.msra.mxu0 0
    %378 = vmatprep.subr.bf16.mxu0 0
    %379 = vmatpush1.bf16.msra.mxu0 0
    %380 = vmatprep.mubr.bf16.mxu0 0
    %381 = vmatmul.mubr.bf16.gmra.mrb[0].mxu0 %v346
    %v382 = vpop.f32.mrb[0].mxu0
    %v383 = vadd.f32 %v343, %v382
    %v384 = vpop.f32.mrb[0].mxu0
    %v385 = vadd.f32 %v343, %v384
    %v386 = vpop.f32.mrb[0].mxu0
    %v387 = vpop.f32.mrb[0].mxu0
    %388 = vdwg.mxu0
    %v391 = vcombine.low %v383, %v385
    %v393 = vunpack.c.l.s4 1966171168
    %v394 = vunpack.c.0.s8 %v393
    %v395 = vlaneseq
    %v396 = vshrl.u32 %v395, 7
    %v397 = vsub.s32 %v394, %v396
    %v398 = vrot.slane %v391, %v397
    %v400 = vunpack.c.l.s4 1966171168
    %v401 = vunpack.c.0.s8 %v400
    %v402 = vlaneseq
    %v403 = vshrl.u32 %v402, 7
    %v404 = vsub.s32 %v401, %v403
    %v405 = vrot.slane %v398, %v404
    %v407 = vlaneseq
    %vm408 = vcmp.ge.s32.totalorder %v407, 0
    %vm409 = vcmp.lt.s32.totalorder %v407, 256
    %vm410 = vmand %vm408, %vm409
    %411 = vst.msk [vmem:[#allocation2] sm:$0x3] %vm410, %v405
    // Predicated region
    $region22: #{tpu_custom_call.1} parent=1 // pred_check
      _
    $region23: #{tpu_custom_call.1} parent=1 // pred_check_branch
      %413 = sbr.rel (0) target = $region25
    $region24: #{tpu_custom_call.1} parent=1 // pred_region
      %s415 = ssub.s32 32, 32
      %416 = vsyncadd [#allocation3], %s415
      %s418 = sshll.u32 [#allocation2], 4
      %s419 = int_to_ptr.vmem [resolvable:$true] %s418
      %421 = dma.vmem_to_hbm [thread:$0]  %s419, 32, %s5, [#allocation3]
    $region25: #{tpu_custom_call.1} parent=1 // pred_fallthru
      _
    // Predicated region
    $region26: #{tpu_custom_call.1} parent=1 // pred_check
      _
    $region27: #{tpu_custom_call.1} parent=1 // pred_check_branch
      %423 = sbr.rel (0) target = $region29
    $region28: #{tpu_custom_call.1} parent=1 // pred_region
      %424 = dma.done [#allocation3], 32
    $region29: #{tpu_custom_call.1} parent=1 // pred_fallthru
      _
    %425 = vsyncpa [#allocation3], 1

</llo_original>
